<compile_context>
chip_gen: v6e
topology: v6e:2x2x1
jax: 0.10.0
libtpu: 0.0.40
codegen_flags: <defaults>
</compile_context>

<pallas_src>
import functools

import jax
import jax.numpy as jnp
from jax.experimental import pallas as pl
from jax.experimental.pallas import tpu as pltpu

_NEG_BIG = -1e30  # finite "-inf" for masking padded softmax columns


def _round_up(x, m):
    return ((x + m - 1) // m) * m


def _sublane(dtype):
    # dtype-native sublane packing: 8 rows for 4-byte, 16 for 2-byte, 32 for 1-byte
    return {4: 8, 2: 16, 1: 32}.get(jnp.dtype(dtype).itemsize, 8)


def _pick_tile(dim, target, align):
    """Return (tile, padded_dim).

    If the whole dim fits inside `target`, use the full dim as the block
    (legal per the (8,128)-or-full-dim rule) and skip padding entirely.
    Otherwise use an `align`-multiple tile and pad the dim up to a multiple.
    """
    if dim <= target:
        return dim, dim
    t = max(align, (target // align) * align)
    return t, _round_up(dim, t)


def _vmem_limit(tile_bytes):
    # actual tile footprint + 50% headroom + 4 MiB, floored at a safe default
    # and capped at v7x's 64 MiB per-TensorCore VMEM (v5e/v6e have 128 MiB).
    return int(min(max(int(tile_bytes * 1.5) + (4 << 20), 32 << 20), 64 << 20))


def _apply_act(y, activation):
    if activation == 'relu':
        return jnp.maximum(y, 0.0)
    if activation == 'sigmoid':
        return jax.nn.sigmoid(y)
    if activation == 'exp':
        return jnp.exp(y)
    if activation == 'none':
        return y
    raise ValueError(f"unexpected activation {activation}")


# --------------------------------------------------------------------------
# Kernel 1: tiled matmul + bias (+ optional fused elementwise activation)
# --------------------------------------------------------------------------
def _matmul_bias_act_kernel(x_ref, wt_ref, b_ref, o_ref, acc_ref, *,
                            activation, precision):
    k = pl.program_id(2)

    @pl.when(k == 0)
    def _():
        acc_ref[...] = jnp.zeros_like(acc_ref)

    # Canonical MXU contraction: lhs (tm, tk) x rhs (tk, tn).  The weight was
    # transposed once in HBM to (K, N), so no per-step XLU transpose is needed
    # and operands stay in their native dtype with f32 accumulation.
    acc_ref[...] += jax.lax.dot_general(
        x_ref[...], wt_ref[...],
        dimension_numbers=(((1,), (0,)), ((), ())),
        preferred_element_type=jnp.float32,
        precision=precision)

    @pl.when(k == pl.num_programs(2) - 1)
    def _():
        y = acc_ref[...] + b_ref[...].astype(jnp.float32)
        o_ref[...] = _apply_act(y, activation).astype(o_ref.dtype)


# --------------------------------------------------------------------------
# Kernel 2: BatchNorm1d batch statistics (per-column mean / rstd), M tiled
# --------------------------------------------------------------------------
def _bn_stats_kernel(y_ref, mean_ref, rstd_ref, sum_ref, sq_ref, *,
                     actual_m, m_tile, eps, mask_rows):
    mi = pl.program_id(1)

    @pl.when(mi == 0)
    def _():
        sum_ref[...] = jnp.zeros_like(sum_ref)
        sq_ref[...] = jnp.zeros_like(sq_ref)

    y = y_ref[...].astype(jnp.float32)
    if mask_rows:
        rows = jax.lax.broadcasted_iota(jnp.int32, y.shape, 0) + mi * m_tile
        y = jnp.where(rows < actual_m, y, 0.0)
    sum_ref[...] += jnp.sum(y, axis=0, keepdims=True)
    sq_ref[...] += jnp.sum(y * y, axis=0, keepdims=True)

    @pl.when(mi == pl.num_programs(1) - 1)
    def _():
        inv_m = 1.0 / actual_m
        mean = sum_ref[...] * inv_m
        var = jnp.maximum(sq_ref[...] * inv_m - mean * mean, 0.0)  # biased var
        mean_ref[...] = mean
        rstd_ref[...] = jax.lax.rsqrt(var + eps)


# --------------------------------------------------------------------------
# Kernel 3: apply BatchNorm (+ optional elementwise activation), elementwise
# --------------------------------------------------------------------------
def _bn_apply_kernel(y_ref, mean_ref, rstd_ref, g_ref, b_ref, o_ref, *,
                     activation):
    y = y_ref[...].astype(jnp.float32)
    y = (y - mean_ref[...]) * rstd_ref[...]
    y = y * g_ref[...].astype(jnp.float32) + b_ref[...].astype(jnp.float32)
    o_ref[...] = _apply_act(y, activation).astype(o_ref.dtype)


# --------------------------------------------------------------------------
# Kernel 4: row softmax (last dim), exact divide for parity with PyTorch
# --------------------------------------------------------------------------
def _softmax_kernel(y_ref, o_ref, *, actual_n):
    y = y_ref[...].astype(jnp.float32)
    tm, tn = y.shape
    if actual_n < tn:
        cols = jax.lax.broadcasted_iota(jnp.int32, (tm, tn), 1)
        y = jnp.where(cols < actual_n, y, _NEG_BIG)
    m = jnp.max(y, axis=-1, keepdims=True)
    e = jnp.exp(y - m)
    denom = jnp.sum(e, axis=-1, keepdims=True)
    o_ref[...] = (e / denom).astype(o_ref.dtype)


# --------------------------------------------------------------------------
# Wrapper
# --------------------------------------------------------------------------
def linear_activation(x, weight, bias, gamma=None, beta=None,
                      activation='relu', batchnorm=False, eps=1e-5,
                      tm=512, tn=512, tk=512, precision=None):
    """Fused Linear + (optional BatchNorm1d, batch stats) + activation.

    x: (B, D_in), weight: (D_out, D_in) [PyTorch layout], bias: (D_out,).
    """
    if activation not in ('relu', 'sigmoid', 'exp', 'softmax'):
        raise ValueError(f"unknown activation {activation}")

    B, D_in = x.shape
    D_out, D_in_w = weight.shape
    assert D_in == D_in_w
    dtype = x.dtype
    x_b = jnp.dtype(x.dtype).itemsize
    w_b = jnp.dtype(weight.dtype).itemsize
    sub = _sublane(dtype)

    # ---- tile choices; pad ONLY when a dim exceeds its tile ----------------
    m_tile, m_pad = _pick_tile(B, max(tm, sub), sub)
    n_tile, n_pad = _pick_tile(D_out, max(tn, 128), 128)
    k_tile, k_pad = _pick_tile(D_in, max(tk, 128), 128)

    # ---- operands: pre-transpose W once to (K, N); pad only if needed ------
    # (For repeated calls with static weights, callers should hoist this
    #  transpose/pad out of the hot path and reuse the result.)
    xp = x if (m_pad, k_pad) == (B, D_in) else jnp.pad(
        x, ((0, m_pad - B), (0, k_pad - D_in)))
    wt = jnp.transpose(weight)                                # (D_in, D_out)
    if (k_pad, n_pad) != (D_in, D_out):
        wt = jnp.pad(wt, ((0, k_pad - D_in), (0, n_pad - D_out)))
    bp = bias if n_pad == D_out else jnp.pad(bias, (0, n_pad - D_out))
    bp = bp.reshape(1, n_pad)

    fuse_act = (not batchnorm) and activation != 'softmax'
    mat_act = activation if fuse_act else 'none'

    mm_vmem = (2 * m_tile * k_tile * x_b + 2 * k_tile * n_tile * w_b
               + 2 * n_tile * 4 + 2 * m_tile * n_tile * x_b
               + m_tile * n_tile * 4)

    y = pl.pallas_call(
        functools.partial(_matmul_bias_act_kernel,
                          activation=mat_act, precision=precision),
        out_shape=jax.ShapeDtypeStruct((m_pad, n_pad), dtype),
        grid_spec=pltpu.PrefetchScalarGridSpec(
            num_scalar_prefetch=0,
            grid=(m_pad // m_tile, n_pad // n_tile, k_pad // k_tile),
            in_specs=[
                pl.BlockSpec((m_tile, k_tile), lambda i, j, k: (i, k)),  # x
                pl.BlockSpec((k_tile, n_tile), lambda i, j, k: (k, j)),  # W^T
                pl.BlockSpec((1, n_tile), lambda i, j, k: (0, j)),       # bias
            ],
            out_specs=pl.BlockSpec((m_tile, n_tile), lambda i, j, k: (i, j)),
            scratch_shapes=[pltpu.VMEM((m_tile, n_tile), jnp.float32)],
        ),
        compiler_params=pltpu.CompilerParams(
            # K (reduction, accumulator resident) -> 'arbitrary'; M/N
            # independent -> 'parallel' (sharded across v7x's 2 TensorCores).
            dimension_semantics=("parallel", "parallel", "arbitrary"),
            vmem_limit_bytes=_vmem_limit(mm_vmem),
        ),
    )(xp, wt, bp)

    if batchnorm:
        if gamma is None:
            gamma = jnp.ones((D_out,), jnp.float32)
        if beta is None:
            beta = jnp.zeros((D_out,), jnp.float32)
        gp = gamma if n_pad == D_out else jnp.pad(gamma, (0, n_pad - D_out))
        btp = beta if n_pad == D_out else jnp.pad(beta, (0, n_pad - D_out))
        gp = gp.reshape(1, n_pad)
        btp = btp.reshape(1, n_pad)

        # --- per-column batch statistics, M tiled (no giant M block) --------
        st_vmem = 2 * m_tile * n_tile * x_b + 6 * n_tile * 4
        mean, rstd = pl.pallas_call(
            functools.partial(_bn_stats_kernel, actual_m=B, m_tile=m_tile,
                              eps=eps, mask_rows=(m_pad > B)),
            out_shape=(jax.ShapeDtypeStruct((1, n_pad), jnp.float32),
                       jax.ShapeDtypeStruct((1, n_pad), jnp.float32)),
            grid_spec=pltpu.PrefetchScalarGridSpec(
                num_scalar_prefetch=0,
                grid=(n_pad // n_tile, m_pad // m_tile),      # N parallel, M reduce
                in_specs=[pl.BlockSpec((m_tile, n_tile), lambda j, i: (i, j))],
                out_specs=[pl.BlockSpec((1, n_tile), lambda j, i: (0, j)),
                           pl.BlockSpec((1, n_tile), lambda j, i: (0, j))],
                scratch_shapes=[pltpu.VMEM((1, n_tile), jnp.float32),
                                pltpu.VMEM((1, n_tile), jnp.float32)],
            ),
            compiler_params=pltpu.CompilerParams(
                dimension_semantics=("parallel", "arbitrary"),
                vmem_limit_bytes=_vmem_limit(st_vmem),
            ),
        )(y)

        # --- normalize + affine + activation, fully (M, N) tiled ------------
        bn_act = activation if activation != 'softmax' else 'none'
        ap_vmem = 4 * m_tile * n_tile * x_b + 8 * n_tile * 4
        y = pl.pallas_call(
            functools.partial(_bn_apply_kernel, activation=bn_act),
            out_shape=jax.ShapeDtypeStruct((m_pad, n_pad), dtype),
            grid_spec=pltpu.PrefetchScalarGridSpec(
                num_scalar_prefetch=0,
                grid=(m_pad // m_tile, n_pad // n_tile),
                in_specs=[
                    pl.BlockSpec((m_tile, n_tile), lambda i, j: (i, j)),
                    pl.BlockSpec((1, n_tile), lambda i, j: (0, j)),
                    pl.BlockSpec((1, n_tile), lambda i, j: (0, j)),
                    pl.BlockSpec((1, n_tile), lambda i, j: (0, j)),
                    pl.BlockSpec((1, n_tile), lambda i, j: (0, j)),
                ],
                out_specs=pl.BlockSpec((m_tile, n_tile), lambda i, j: (i, j)),
            ),
            compiler_params=pltpu.CompilerParams(
                dimension_semantics=("parallel", "parallel"),
                vmem_limit_bytes=_vmem_limit(ap_vmem),
            ),
        )(y, mean, rstd, gp, btp)

    if activation == 'softmax':
        # Lightweight row-softmax kernel; shrink the M tile if the (row, N_pad)
        # block would be large so the pipeline stays double-bufferable.
        sm_tile = m_tile
        while (4 * sm_tile * n_pad * x_b > (24 << 20)
               and sm_tile % (2 * sub) == 0
               and m_pad % (sm_tile // 2) == 0):
            sm_tile //= 2
        sm_vmem = 4 * sm_tile * n_pad * x_b + 2 * sm_tile * n_pad * 4
        y = pl.pallas_call(
            functools.partial(_softmax_kernel, actual_n=D_out),
            out_shape=jax.ShapeDtypeStruct((m_pad, n_pad), dtype),
            grid_spec=pltpu.PrefetchScalarGridSpec(
                num_scalar_prefetch=0,
                grid=(m_pad // sm_tile,),
                in_specs=[pl.BlockSpec((sm_tile, n_pad), lambda i: (i, 0))],
                out_specs=pl.BlockSpec((sm_tile, n_pad), lambda i: (i, 0)),
            ),
            compiler_params=pltpu.CompilerParams(
                dimension_semantics=("parallel",),
                vmem_limit_bytes=_vmem_limit(sm_vmem),
            ),
        )(y)
        # TODO(synk): fully-online (flash-style) softmax across N tiles for
        # very large D_out; this kernel holds one full feature row per block.

    out = y
    if (m_pad, n_pad) != (B, D_out):
        out = out[:B, :D_out]
    return out
    # TODO(synk): BatchNorm1d running_mean/running_var buffer updates (a
    # training-mode side effect) are not reproduced; output uses batch stats.


if __name__ == "__main__":
    key = jax.random.PRNGKey(0)
    k_x, k_w, k_b, k_g, k_be = jax.random.split(key, 5)

    batch, input_dim, out_dim = 8, 32, 16

    x = jax.random.normal(k_x, (batch, input_dim), jnp.float32)
    weight = jax.random.normal(k_w, (out_dim, input_dim), jnp.float32) * 0.1
    bias = jax.random.normal(k_b, (out_dim,), jnp.float32) * 0.1

    y_lin = jnp.dot(x, weight.T, precision=jax.lax.Precision.HIGHEST) + bias

    # --- default config: batchnorm=False, activation='relu' -----------------
    out = linear_activation(x, weight, bias, activation='relu', batchnorm=False)
    out = jax.block_until_ready(out)
    ref = jnp.maximum(y_lin, 0.0)
    assert out.shape == (batch, out_dim)
    assert jnp.allclose(out, ref, atol=1e-4, rtol=1e-4)

    # --- batchnorm=True, activation='sigmoid' (training-mode batch stats) ---
    gamma = 1.0 + 0.1 * jax.random.normal(k_g, (out_dim,), jnp.float32)
    beta = 0.1 * jax.random.normal(k_be, (out_dim,), jnp.float32)
    out_bn = linear_activation(x, weight, bias, gamma, beta,
                               activation='sigmoid', batchnorm=True)
    out_bn = jax.block_until_ready(out_bn)
    mu = jnp.mean(y_lin, axis=0, keepdims=True)
    var = jnp.mean((y_lin - mu) ** 2, axis=0, keepdims=True)  # biased, as in BN
    ref_bn = jax.nn.sigmoid((y_lin - mu) / jnp.sqrt(var + 1e-5) * gamma + beta)
    assert jnp.allclose(out_bn, ref_bn, atol=1e-4, rtol=1e-4)

    # --- activation='softmax' (tiled matmul + row-softmax kernel) -----------
    out_sm = linear_activation(x, weight, bias, activation='softmax',
                               batchnorm=False)
    out_sm = jax.block_until_ready(out_sm)
    ref_sm = jax.nn.softmax(y_lin, axis=-1)
    assert jnp.allclose(out_sm, ref_sm, atol=1e-4, rtol=1e-4)

    print("KERNEL_OK")
</pallas_src>

<mosaic_0001>
module attributes {stable_mosaic.version = 11 : i64} {
  func.func @_matmul_bias_act_kernel(%arg0: i32, %arg1: i32, %arg2: i32, %arg3: memref<8x32xf32, #tpu.memory_space<vmem>>, %arg4: memref<32x16xf32, #tpu.memory_space<vmem>>, %arg5: memref<1x16xf32, #tpu.memory_space<vmem>>, %arg6: memref<8x16xf32, #tpu.memory_space<vmem>>, %arg7: memref<8x16xf32, #tpu.memory_space<vmem>>) attributes {dimension_semantics = [#tpu.dimension_semantics<parallel>, #tpu.dimension_semantics<parallel>, #tpu.dimension_semantics<arbitrary>], iteration_bounds = array<i64: 1, 1, 1>, scalar_prefetch = 0 : i64, scratch_operands = 1 : i64, tpu.core_type = #tpu.core_type<tc>, window_params = [{transform_indices = @transform_0, window_bounds = array<i64: 8, 32>}, {transform_indices = @transform_1, window_bounds = array<i64: 32, 16>}, {transform_indices = @transform_2, window_bounds = array<i64: 1, 16>}, {transform_indices = @transform_3, window_bounds = array<i64: 8, 16>}]} {
    %c0_i32 = arith.constant 0 : i32
    %0 = arith.cmpi eq, %arg2, %c0_i32 : i32
    %1 = arith.extui %0 : i1 to i32
    %c0_i32_0 = arith.constant 0 : i32
    %2 = arith.cmpi ne, %1, %c0_i32_0 : i32
    scf.if %2 {
      %cst_10 = arith.constant 0.000000e+00 : f32
      %12 = vector.broadcast %cst_10 : f32 to vector<8x16xf32>
      %c0_11 = arith.constant 0 : index
      %c0_12 = arith.constant 0 : index
      %13 = vector.load %arg7[%c0_11, %c0_12] : memref<8x16xf32, #tpu.memory_space<vmem>>, vector<8x16xf32>
      tpu.vector_store %arg7[%c0_11, %c0_12], %12 {strides = array<i32>} : memref<8x16xf32, #tpu.memory_space<vmem>>, vector<8x16xf32>,
    } else {
    }
    %c0 = arith.constant 0 : index
    %c0_1 = arith.constant 0 : index
    %3 = vector.load %arg7[%c0, %c0_1] : memref<8x16xf32, #tpu.memory_space<vmem>>, vector<8x16xf32>
    %c0_2 = arith.constant 0 : index
    %c0_3 = arith.constant 0 : index
    %4 = vector.load %arg3[%c0_2, %c0_3] : memref<8x32xf32, #tpu.memory_space<vmem>>, vector<8x32xf32>
    %c0_4 = arith.constant 0 : index
    %c0_5 = arith.constant 0 : index
    %5 = vector.load %arg4[%c0_4, %c0_5] : memref<32x16xf32, #tpu.memory_space<vmem>>, vector<32x16xf32>
    %cst = arith.constant dense<0.000000e+00> : vector<8x16xf32>
    %6 = tpu.matmul %4, %5, %cst {dimension_numbers = #tpu.dot_dimension_numbers<[1], [0], [0], [1], [0, 0, 1, 1], [], []>} : vector<8x32xf32>, vector<32x16xf32>, vector<8x16xf32> -> vector<8x16xf32>
    %7 = arith.addf %3, %6 : vector<8x16xf32>
    %c0_6 = arith.constant 0 : index
    %c0_7 = arith.constant 0 : index
    %8 = vector.load %arg7[%c0_6, %c0_7] : memref<8x16xf32, #tpu.memory_space<vmem>>, vector<8x16xf32>
    tpu.vector_store %arg7[%c0_6, %c0_7], %7 {strides = array<i32>} : memref<8x16xf32, #tpu.memory_space<vmem>>, vector<8x16xf32>,
    %c0_i32_8 = arith.constant 0 : i32
    %9 = arith.cmpi eq, %arg2, %c0_i32_8 : i32
    %10 = arith.extui %9 : i1 to i32
    %c0_i32_9 = arith.constant 0 : i32
    %11 = arith.cmpi ne, %10, %c0_i32_9 : i32
    scf.if %11 {
      %c0_10 = arith.constant 0 : index
      %c0_11 = arith.constant 0 : index
      %12 = vector.load %arg7[%c0_10, %c0_11] : memref<8x16xf32, #tpu.memory_space<vmem>>, vector<8x16xf32>
      %c0_12 = arith.constant 0 : index
      %c0_13 = arith.constant 0 : index
      %13 = vector.load %arg5[%c0_12, %c0_13] : memref<1x16xf32, #tpu.memory_space<vmem>>, vector<1x16xf32>
      %14 = vector.broadcast %13 : vector<1x16xf32> to vector<8x16xf32>
      %15 = arith.addf %12, %14 : vector<8x16xf32>
      %cst_14 = arith.constant 0.000000e+00 : f32
      %16 = vector.broadcast %cst_14 : f32 to vector<8x16xf32>
      %17 = arith.maximumf %15, %16 : vector<8x16xf32>
      %c0_15 = arith.constant 0 : index
      %c0_16 = arith.constant 0 : index
      %18 = vector.load %arg6[%c0_15, %c0_16] : memref<8x16xf32, #tpu.memory_space<vmem>>, vector<8x16xf32>
      tpu.vector_store %arg6[%c0_15, %c0_16], %17 {strides = array<i32>} : memref<8x16xf32, #tpu.memory_space<vmem>>, vector<8x16xf32>,
    } else {
    }
    return
  }
  func.func @transform_0(%arg0: i32, %arg1: i32, %arg2: i32) -> (i32, i32) {
    %c0_i32 = arith.constant 0 : i32
    return %arg0, %arg2 : i32, i32
  }
  func.func @transform_1(%arg0: i32, %arg1: i32, %arg2: i32) -> (i32, i32) {
    %c0_i32 = arith.constant 0 : i32
    return %arg2, %arg1 : i32, i32
  }
  func.func @transform_2(%arg0: i32, %arg1: i32, %arg2: i32) -> (i32, i32) {
    %c0_i32 = arith.constant 0 : i32
    %c0_i32_0 = arith.constant 0 : i32
    return %c0_i32, %arg1 : i32, i32
  }
  func.func @transform_3(%arg0: i32, %arg1: i32, %arg2: i32) -> (i32, i32) {
    %c0_i32 = arith.constant 0 : i32
    return %arg0, %arg1 : i32, i32
  }
}

</mosaic_0001>

<llo_original>
// kernel: tpu_custom_call.1
$region0: #{tpu_custom_call.1}
  #allocation0 [shape = 'u32[]', space=smem, size = 0x4, offset = 0x4, fixed_abs, tag = 'smem constant byte address 0x4 - core index']
  #allocation1 [shape = 'u32[144,128]{1,0:T(1,128)}', space=vmem, size = 0x12000, scoped, tag = 'internal scratch']
  #allocation2 [shape = 'f32[8,16]{1,0:T(8,128)}', space=vmem, size = 0x1000, scoped, tag = 'scratch operand']
  %s0 = inlined_call_operand.vmem [shape: f32[8,32], index: 0, kind: input, shape index: {}]
  %s1 = inlined_call_operand.vmem [shape: f32[32,16], index: 1, kind: input, shape index: {}]
  %s2 = inlined_call_operand.vmem [shape: f32[1,16], index: 2, kind: input, shape index: {}]
  %s3 = inlined_call_operand.hbm [shape: f32[8,16], index: 3, kind: output, shape index: {}]
  %s4 = sld [smem:[#allocation0]]
  $region30: #{tpu_custom_call.1} parent=0
    _
  %s6 = ssub.s32 1, %s4
  %s7 = scalar_select 0, %s6, %s4
  $region1: #{tpu_custom_call.1} parent=0
    #allocation3 [shape = 'u8[4096]{0}', space=vmem, size = 0x1000, scoped, tag = 'output window, operand 0, single buffered']
    #allocation4 [shape = 's32[1]{0}', space=sflag, size = 0x4, scoped, tag = 'scoped memory for tpu_custom_call.1']
    %8 = vsyncpa [#allocation4], 0
    // Predicated region
    $region2: #{tpu_custom_call.1} parent=1 // pred_check
      _
    $region3: #{tpu_custom_call.1} parent=1 // pred_check_branch
      %10 = sbr.rel (0) target = $region5
    $region4: #{tpu_custom_call.1} parent=1 // pred_region
      _
    $region5: #{tpu_custom_call.1} parent=1 // pred_fallthru
      _
    // Predicated region
    $region6: #{tpu_custom_call.1} parent=1 // pred_check
      _
    $region7: #{tpu_custom_call.1} parent=1 // pred_check_branch
      %12 = sbr.rel (0) target = $region9
    $region8: #{tpu_custom_call.1} parent=1 // pred_region
      _
    $region9: #{tpu_custom_call.1} parent=1 // pred_fallthru
      _
    // Predicated region
    $region10: #{tpu_custom_call.1} parent=1 // pred_check
      _
    $region11: #{tpu_custom_call.1} parent=1 // pred_check_branch
      %14 = sbr.rel (0) target = $region13
    $region12: #{tpu_custom_call.1} parent=1 // pred_region
      _
    $region13: #{tpu_custom_call.1} parent=1 // pred_fallthru
      _
    %p15 = scmp.eq.s32.totalorder 0, 0
    // Predicated region
    $region14: #{tpu_custom_call.1} parent=1 // pred_check
      %p16 = pneg %p15
    $region15: #{tpu_custom_call.1} parent=1 // pred_check_branch
      %18 = sbr.rel (%p16) target = $region17
    $region16: #{tpu_custom_call.1} parent=1 // pred_region
      %vm19 = vcmask 130048
      %20 = vst.msk [vmem:[#allocation2] sm:$0xff] %vm19, 0.0
    $region17: #{tpu_custom_call.1} parent=1 // pred_fallthru
      _
    %v21 = vld [vmem:[#allocation2] sm:$0xff]
    %v22 = vld [vmem:[%s0] sm:$0xff]
    %v23 = vld [vmem:[%s1] sm:$0xff]
    %v24 = vld [vmem:[%s1 + $0x8] sm:$0xff]
    %v25 = vld [vmem:[%s1 + $0x10] sm:$0xff]
    %v26 = vld [vmem:[%s1 + $0x18] sm:$0xff]
    %vm27 = vcmask 261120
    %v29 = vsel %vm27, %v22, 0
    %31 = vmatprep.subr.mxu0 0.0
    %32 = vmatpush1.msra.mxu0 0.0
    %33 = vmatprep.subr.mxu0 0.0
    %34 = vmatpush1.msra.mxu0 0.0
    %35 = vmatprep.subr.mxu0 0.0
    %36 = vmatpush1.msra.mxu0 0.0
    %37 = vmatprep.subr.mxu0 0.0
    %38 = vmatpush1.msra.mxu0 0.0
    %39 = vmatprep.subr.mxu0 0.0
    %40 = vmatpush1.msra.mxu0 0.0
    %41 = vmatprep.subr.mxu0 0.0
    %42 = vmatpush1.msra.mxu0 0.0
    %43 = vmatprep.subr.mxu0 0.0
    %44 = vmatpush1.msra.mxu0 0.0
    %45 = vmatprep.subr.mxu0 0.0
    %46 = vmatpush1.msra.mxu0 0.0
    %47 = vmatprep.subr.mxu0 0.0
    %48 = vmatpush1.msra.mxu0 0.0
    %49 = vmatprep.subr.mxu0 0.0
    %50 = vmatpush1.msra.mxu0 0.0
    %51 = vmatprep.subr.mxu0 0.0
    %52 = vmatpush1.msra.mxu0 0.0
    %53 = vmatprep.subr.mxu0 0.0
    %54 = vmatpush1.msra.mxu0 0.0
    %55 = vmatprep.subr.mxu0 0.0
    %56 = vmatpush1.msra.mxu0 %v26
    %57 = vmatprep.subr.mxu0 0.0
    %58 = vmatpush1.msra.mxu0 %v25
    %59 = vmatprep.subr.mxu0 0.0
    %60 = vmatpush1.msra.mxu0 %v24
    %61 = vmatprep.subr.mxu0 0.0
    %62 = vmatpush1.msra.mxu0 %v23
    %63 = vmatprep.subr.mxu0 0.0
    %64 = vmatpush2.msra.mxu0 0.0
    %65 = vmatprep.subr.mxu0 0.0
    %66 = vmatpush2.msra.mxu0 0.0
    %67 = vmatprep.subr.mxu0 0.0
    %68 = vmatpush2.msra.mxu0 0.0
    %69 = vmatprep.subr.mxu0 0.0
    %70 = vmatpush2.msra.mxu0 0.0
    %71 = vmatprep.subr.mxu0 0.0
    %72 = vmatpush2.msra.mxu0 0.0
    %73 = vmatprep.subr.mxu0 0.0
    %74 = vmatpush2.msra.mxu0 0.0
    %75 = vmatprep.subr.mxu0 0.0
    %76 = vmatpush2.msra.mxu0 0.0
    %77 = vmatprep.subr.mxu0 0.0
    %78 = vmatpush2.msra.mxu0 0.0
    %79 = vmatprep.subr.mxu0 0.0
    %80 = vmatpush2.msra.mxu0 0.0
    %81 = vmatprep.subr.mxu0 0.0
    %82 = vmatpush2.msra.mxu0 0.0
    %83 = vmatprep.subr.mxu0 0.0
    %84 = vmatpush2.msra.mxu0 0.0
    %85 = vmatprep.subr.mxu0 0.0
    %86 = vmatpush2.msra.mxu0 0.0
    %87 = vmatprep.subr.mxu0 0.0
    %88 = vmatpush2.msra.mxu0 0.0
    %89 = vmatprep.subr.mxu0 0.0
    %90 = vmatpush2.msra.mxu0 0.0
    %91 = vmatprep.subr.mxu0 0.0
    %92 = vmatpush2.msra.mxu0 0.0
    %93 = vmatprep.subr.mxu0 0.0
    %94 = vmatpush2.msra.mxu0 0.0
    %95 = vmatprep.mubr.f32.mxu0 0.0
    %96 = vmatmul.mubr.f32.gmra.mxu0 %v29
    %v97 = vpop.f32.mrf.mxu0
    %v98 = vadd.f32 0.0, %v97
    %v99 = vpop.f32.mrf.mxu0
    %100 = vdwg.mxu0
    %v101 = vadd.f32 %v21, %v98
    %vm102 = vcmask 130048
    %103 = vst.msk [vmem:[#allocation2] sm:$0xff] %vm102, %v101
    // Predicated region
    $region18: #{tpu_custom_call.1} parent=1 // pred_check
      %p104 = pneg %p15
    $region19: #{tpu_custom_call.1} parent=1 // pred_check_branch
      %106 = sbr.rel (%p104) target = $region21
    $region20: #{tpu_custom_call.1} parent=1 // pred_region
      %v107 = vld [vmem:[#allocation2] sm:$0xff]
      %v108 = vld [vmem:[%s2] sm:$0x1]
      %v110 = vlaneseq
      %v111 = vshrl.u32 %v110, 7
      %v112 = vsub.s32 0, %v111
      %v113 = vrot.slane %v108, %v112
      %v115 = vadd.f32 %v107, %v113
      %v116 = vmax.f32 %v115, 0.0
      %117 = vst.msk [vmem:[#allocation3] sm:$0xff] %vm102, %v116
    $region21: #{tpu_custom_call.1} parent=1 // pred_fallthru
      _
    // Predicated region
    $region22: #{tpu_custom_call.1} parent=1 // pred_check
      _
    $region23: #{tpu_custom_call.1} parent=1 // pred_check_branch
      %119 = sbr.rel (0) target = $region25
    $region24: #{tpu_custom_call.1} parent=1 // pred_region
      %s121 = ssub.s32 128, 128
      %122 = vsyncadd [#allocation4], %s121
      %s124 = sshll.u32 [#allocation3], 4
      %s125 = int_to_ptr.vmem [resolvable:$true] %s124
      %127 = dma.vmem_to_hbm [thread:$0]  %s125, 128, %s3, [#allocation4]
    $region25: #{tpu_custom_call.1} parent=1 // pred_fallthru
      _
    // Predicated region
    $region26: #{tpu_custom_call.1} parent=1 // pred_check
      _
    $region27: #{tpu_custom_call.1} parent=1 // pred_check_branch
      %129 = sbr.rel (0) target = $region29
    $region28: #{tpu_custom_call.1} parent=1 // pred_region
      %130 = dma.done [#allocation4], 128
    $region29: #{tpu_custom_call.1} parent=1 // pred_fallthru
      _
    %131 = vsyncpa [#allocation4], 1

</llo_original>
